<compile_context>
chip_gen: v7x
topology: tpu7x:2x2x1
jax: 0.10.0
libtpu: 0.0.40
codegen_flags: <defaults>
</compile_context>

<pallas_src>
import jax
import jax.numpy as jnp
from jax import lax
from jax.experimental import pallas as pl
from jax.experimental.pallas import tpu as pltpu


def abs_pool_kernel(x_ref, o_ref):
    # x_ref: (TB, C, TS, 128)   o_ref: (TB, TS, 128)
    C = x_ref.shape[1]

    v0 = x_ref[:, 0, :, :].astype(jnp.float32)
    best_val = v0
    best_abs = jnp.abs(v0)

    def step(v, best_abs, best_val):
        a = jnp.abs(v)
        take = a > best_abs                      # strict > keeps first index on ties
        return jnp.where(take, a, best_abs), jnp.where(take, v, best_val)

    if C <= 16:
        # Typical small C: statically unrolled channel scan (per-channel ref loads
        # keep vreg pressure at ~3 slabs).
        for c in range(1, C):
            best_abs, best_val = step(
                x_ref[:, c, :, :].astype(jnp.float32), best_abs, best_val)
    else:
        def body(c, carry):
            ba, bv = carry
            return step(x_ref[:, c, :, :].astype(jnp.float32), ba, bv)
        best_abs, best_val = lax.fori_loop(1, C, body, (best_abs, best_val))

    o_ref[...] = best_val.astype(o_ref.dtype)


def _round_up(a, b):
    return ((a + b - 1) // b) * b


def _vmem_budget():
    """Per-generation VMEM limit and per-step working-set budget (bytes)."""
    try:
        info = pltpu.get_tpu_info()
        cap = int(getattr(info, "vmem_capacity_bytes", 64 << 20))
    except Exception:
        cap = 64 << 20
    limit = min(cap // 2, 64 << 20)   # 64 MiB on v5e/v6e, 32 MiB on v7x (per TC)
    budget = (limit * 3) // 4         # working-set target with headroom
    return limit, budget


def _choose_tiles(B, C, S, itemsize, budget):
    # Per-step working set for a (TB=1, TS=1) column of 128 lanes:
    #   double-buffered input block + double-buffered output block + f32 scan temps.
    unit = 128 * (2 * C * itemsize + 2 * itemsize + 3 * 4)

    # Spatial tile: full S when it fits, otherwise the largest multiple of 8
    # sublanes under budget (ragged tail handled by Pallas partial blocks).
    if S <= 8 or unit * S <= budget:
        TS = S
    else:
        TS = min((S // 8) * 8, max(8, ((budget // unit) // 8) * 8))

    # Batch tile: fold images to amortize the ~0.35us/step overhead, preferring
    # a divisor of B; a ragged last batch block is cheap (no pad traffic) so only
    # insist on divisibility when it doesn't cost much folding.
    tb_max = int(max(1, min(B, budget // max(unit * TS, 1))))
    TB = tb_max
    while TB > 1 and B % TB != 0:
        TB -= 1
    if TB < max(1, tb_max // 2):
        TB = tb_max

    # Ensure >=2 grid blocks when possible so both v7x TensorCores get work
    # (grid axes are "parallel"); no effect on v5e/v6e.
    if pl.cdiv(B, TB) * pl.cdiv(S, TS) < 2:
        if B > 1:
            TB = (B + 1) // 2
        elif S > 8:
            TS = max(8, ((TS // 2) // 8) * 8)
    return TB, TS


def abs_pool(x):
    """x: (B, C, H, W) -> (B, H, W): signed value with max |.| over the C axis."""
    B, C, H, W = x.shape
    N = H * W
    itemsize = x.dtype.itemsize

    if N % 128 == 0:
        Np = N
        x4 = x.reshape(B, C, N // 128, 128)      # free reshape -> C off the vreg axes
    else:
        # TODO(synk): last-resort pad for a ragged spatial size; a masked partial
        # last lane-block would avoid this extra HBM copy.
        Np = _round_up(N, 128)
        x4 = jnp.pad(x.reshape(B, C, N), ((0, 0), (0, 0), (0, Np - N)))
        x4 = x4.reshape(B, C, Np // 128, 128)
    S = Np // 128

    vmem_limit, budget = _vmem_budget()
    TB, TS = _choose_tiles(B, C, S, itemsize, budget)
    grid = (pl.cdiv(B, TB), pl.cdiv(S, TS))

    out = pl.pallas_call(
        abs_pool_kernel,
        out_shape=jax.ShapeDtypeStruct((B, S, 128), x.dtype),
        grid_spec=pltpu.PrefetchScalarGridSpec(
            num_scalar_prefetch=0,
            grid=grid,
            # If an xprof/bundle profile on v7x shows exposed DMA gaps, add
            # pipeline_mode=pl.Buffered(3) to this input spec.
            in_specs=[pl.BlockSpec((TB, C, TS, 128), lambda b, s: (b, 0, s, 0))],
            out_specs=pl.BlockSpec((TB, TS, 128), lambda b, s: (b, s, 0)),
        ),
        compiler_params=pltpu.CompilerParams(
            dimension_semantics=("parallel", "parallel"),
            vmem_limit_bytes=vmem_limit,
        ),
        cost_estimate=pl.CostEstimate(
            flops=5 * B * C * Np,
            transcendentals=0,
            bytes_accessed=(C + 1) * B * Np * itemsize,
        ),
    )(x4)

    out = out.reshape(B, Np)
    if Np != N:
        out = out[:, :N]
    return out.reshape(B, H, W)


if __name__ == "__main__":
    key = jax.random.PRNGKey(0)

    def torch_ref(x):
        idx = jnp.argmax(jnp.abs(x), axis=1, keepdims=True)
        return jnp.take_along_axis(x, idx, axis=1).squeeze(1)

    # Primary shape from the module spec.
    x = jax.random.normal(key, (2, 4, 16, 16), dtype=jnp.float32)
    y = abs_pool(x)
    jax.block_until_ready(y)
    ref = torch_ref(x)
    assert y.shape == ref.shape == (2, 16, 16)
    assert jnp.allclose(y, ref), "mismatch vs reference (primary shape)"

    # Secondary shape: exercises the no-pad ragged (partial last batch block) path.
    x2 = jax.random.normal(jax.random.PRNGKey(0), (3, 5, 8, 16), dtype=jnp.float32)
    y2 = abs_pool(x2)
    jax.block_until_ready(y2)
    assert jnp.allclose(y2, torch_ref(x2)), "mismatch vs reference (ragged shape)"

    print("KERNEL_OK")
</pallas_src>

<mosaic_0001>
module attributes {stable_mosaic.version = 11 : i64} {
  func.func @abs_pool_kernel(%arg0: i32, %arg1: i32, %arg2: memref<1x4x2x128xf32, #tpu.memory_space<vmem>>, %arg3: memref<1x2x128xf32, #tpu.memory_space<vmem>>) attributes {dimension_semantics = [#tpu.dimension_semantics<parallel>, #tpu.dimension_semantics<parallel>], iteration_bounds = array<i64: 2, 1>, scalar_prefetch = 0 : i64, scratch_operands = 0 : i64, tpu.core_type = #tpu.core_type<tc>, window_params = [{transform_indices = @transform_0, window_bounds = array<i64: 1, 4, 2, 128>}, {transform_indices = @transform_1, window_bounds = array<i64: 1, 2, 128>}]} {
    %c0 = arith.constant 0 : index
    %c0_0 = arith.constant 0 : index
    %c0_1 = arith.constant 0 : index
    %c0_2 = arith.constant 0 : index
    %0 = vector.load %arg2[%c0, %c0_0, %c0_1, %c0_2] : memref<1x4x2x128xf32, #tpu.memory_space<vmem>>, vector<1x1x2x128xf32>
    %1 = vector.shape_cast %0 : vector<1x1x2x128xf32> to vector<1x2x128xf32>
    %2 = math.absf %1 : vector<1x2x128xf32>
    %c0_3 = arith.constant 0 : index
    %c1 = arith.constant 1 : index
    %c0_4 = arith.constant 0 : index
    %c0_5 = arith.constant 0 : index
    %3 = vector.load %arg2[%c0_3, %c1, %c0_4, %c0_5] : memref<1x4x2x128xf32, #tpu.memory_space<vmem>>, vector<1x1x2x128xf32>
    %4 = vector.shape_cast %3 : vector<1x1x2x128xf32> to vector<1x2x128xf32>
    %5 = math.absf %4 : vector<1x2x128xf32>
    %6 = arith.cmpf ogt, %5, %2 : vector<1x2x128xf32>
    %7 = arith.select %6, %5, %2 : vector<1x2x128xi1>, vector<1x2x128xf32>
    %8 = arith.select %6, %4, %1 : vector<1x2x128xi1>, vector<1x2x128xf32>
    %c0_6 = arith.constant 0 : index
    %c2 = arith.constant 2 : index
    %c0_7 = arith.constant 0 : index
    %c0_8 = arith.constant 0 : index
    %9 = vector.load %arg2[%c0_6, %c2, %c0_7, %c0_8] : memref<1x4x2x128xf32, #tpu.memory_space<vmem>>, vector<1x1x2x128xf32>
    %10 = vector.shape_cast %9 : vector<1x1x2x128xf32> to vector<1x2x128xf32>
    %11 = math.absf %10 : vector<1x2x128xf32>
    %12 = arith.cmpf ogt, %11, %7 : vector<1x2x128xf32>
    %13 = arith.select %12, %11, %7 : vector<1x2x128xi1>, vector<1x2x128xf32>
    %14 = arith.select %12, %10, %8 : vector<1x2x128xi1>, vector<1x2x128xf32>
    %c0_9 = arith.constant 0 : index
    %c3 = arith.constant 3 : index
    %c0_10 = arith.constant 0 : index
    %c0_11 = arith.constant 0 : index
    %15 = vector.load %arg2[%c0_9, %c3, %c0_10, %c0_11] : memref<1x4x2x128xf32, #tpu.memory_space<vmem>>, vector<1x1x2x128xf32>
    %16 = vector.shape_cast %15 : vector<1x1x2x128xf32> to vector<1x2x128xf32>
    %17 = math.absf %16 : vector<1x2x128xf32>
    %18 = arith.cmpf ogt, %17, %13 : vector<1x2x128xf32>
    %19 = arith.select %18, %16, %14 : vector<1x2x128xi1>, vector<1x2x128xf32>
    %c0_12 = arith.constant 0 : index
    %c0_13 = arith.constant 0 : index
    %c0_14 = arith.constant 0 : index
    %20 = vector.load %arg3[%c0_12, %c0_13, %c0_14] : memref<1x2x128xf32, #tpu.memory_space<vmem>>, vector<1x2x128xf32>
    tpu.vector_store %arg3[%c0_12, %c0_13, %c0_14], %19 {strides = array<i32>} : memref<1x2x128xf32, #tpu.memory_space<vmem>>, vector<1x2x128xf32>,
    return
  }
  func.func @transform_0(%arg0: i32, %arg1: i32) -> (i32, i32, i32, i32) {
    %c0_i32 = arith.constant 0 : i32
    %c0_i32_0 = arith.constant 0 : i32
    %c0_i32_1 = arith.constant 0 : i32
    return %arg0, %c0_i32, %arg1, %c0_i32_0 : i32, i32, i32, i32
  }
  func.func @transform_1(%arg0: i32, %arg1: i32) -> (i32, i32, i32) {
    %c0_i32 = arith.constant 0 : i32
    %c0_i32_0 = arith.constant 0 : i32
    return %arg0, %arg1, %c0_i32 : i32, i32, i32
  }
}

</mosaic_0001>

<llo_original>
// kernel: tpu_custom_call.1
$region0: #{tpu_custom_call.1}
  #allocation0 [shape = 'u32[]', space=smem, size = 0x4, offset = 0x4, fixed_abs, tag = 'smem constant byte address 0x4 - core index']
  #allocation1 [shape = 'u32[144,128]{1,0:T(1,128)}', space=vmem, size = 0x12000, scoped, tag = 'internal scratch']
  %s0 = inlined_call_operand.hbm [shape: f32[2,4,2,128], index: 0, kind: input, shape index: {}]
  %s1 = inlined_call_operand.hbm [shape: f32[2,2,128], index: 1, kind: output, shape index: {}]
  %s2 = sld [smem:[#allocation0]]
  $region41: #{tpu_custom_call.1} parent=0
    _
  %s4 = ssub.s32 1, %s2
  %s5 = scalar_select 0, %s4, %s2
  $region1: #{tpu_custom_call.1} parent=0
    #allocation2 [shape = 'u8[8192]{0}', space=vmem, size = 0x2000, scoped, tag = 'input window, operand 0']
    #allocation3 [shape = 's32[2]{0}', space=sflag, size = 0x8, scoped, tag = 'scoped memory for tpu_custom_call.1']
    #allocation4 [shape = 's32[2]{0}', space=sflag, size = 0x8, scoped, tag = 'scoped memory for tpu_custom_call.1']
    #allocation5 [shape = 'u8[2048]{0}', space=vmem, size = 0x800, scoped, tag = 'output window, operand 0']
    %6 = vsyncpa [#allocation3], 0
    %s7 = scalar_lea.sflag [#allocation3], 1
    %8 = vsyncpa %s7, 0
    %9 = vsyncpa [#allocation4], 0
    %s10 = scalar_lea.sflag [#allocation4], 1
    %11 = vsyncpa %s10, 0
    loop: start=0, step=1, limit=4
    $region2: #{tpu_custom_call.1} parent=1 // loop_pre_header
      _
    $region3: #{tpu_custom_call.1} parent=1 // loop_header
      %s13 = sphi 0, %s17
      %p14 = scmp.ge.s32.totalorder %s13, 4
      %s20 = sphi 0, %s32
      %s21 = sphi 0, %s28
      %s22 = sphi 0, %s20
      %s23 = sphi 0, %s21
      %s24 = sphi 0, %s22
      %s25 = sphi 0, %s23
      %s37 = sphi 0, %s39
      %s40 = sphi 0, %s37
      %s41 = sphi 0, %s40
      %s57 = sphi 0, %s41
      %s65 = sphi 0, %s67
      %s68 = sphi 0, %s65
      %s69 = sphi 0, %s68
      %s85 = sphi 0, %s69
    $region4: #{tpu_custom_call.1} parent=1 // loop_header_branch
      %16 = sbr.rel (%p14) target = $region8
    $region5: #{tpu_custom_call.1} parent=1 // loop_body
      %s18 = ssub.s32 %s13, 1
      %s19 = ssub.s32 %s13, 2
      %s26 = sadd.s32 1, %s21
      %p27 = scmp.ge.s32.totalorder %s26, 1
      %s28 = scalar_select %p27, 0, %s26
      %s29 = sadd.s32 1, %s20
      %s30 = scalar_select %p27, %s29, %s20
      %p31 = scmp.ge.s32.totalorder %s30, 2
      %s32 = scalar_select %p31, 0, %s30
      %s33 = ssub.s32 %s20, %s32
      %s34 = ssub.s32 %s21, %s28
      %s35 = sor.u32 %s33, %s34
      %p36 = scmp.eq.s32.totalorder %s35, 0
      %s38 = sadd.s32 %s37, 1
      %s39 = scalar_select %p36, %s37, %s38
      %p42 = pneg %p36
      %p43 = scmp.eq.s32.totalorder %s13, 1
      %p44 = por %p42, %p43
      %p45 = scmp.ne.s32.totalorder %s37, %s40
      %p46 = scmp.eq.s32.totalorder %s13, 0
      %p47 = por %p45, %p46
      %p48 = scmp.ne.s32.totalorder %s37, %s40
      %p49 = scmp.eq.s32.totalorder %s18, 1
      %p50 = por %p48, %p49
      %p51 = scmp.ne.s32.totalorder %s40, %s41
      %p52 = scmp.eq.s32.totalorder %s18, 0
      %p53 = por %p51, %p52
      %p54 = scmp.ne.s32.totalorder %s40, %s41
      %p55 = scmp.eq.s32.totalorder %s19, 1
      %p56 = por %p54, %p55
      %p58 = scmp.ne.s32.totalorder %s41, %s57
      %p59 = scmp.eq.s32.totalorder %s19, 0
      %p60 = por %p58, %p59
      %s61 = ssub.s32 %s20, %s32
      %s62 = ssub.s32 %s21, %s28
      %s63 = sor.u32 %s61, %s62
      %p64 = scmp.eq.s32.totalorder %s63, 0
      %s66 = sadd.s32 %s65, 1
      %s67 = scalar_select %p64, %s65, %s66
      %p70 = pneg %p64
      %p71 = scmp.eq.s32.totalorder %s13, 1
      %p72 = por %p70, %p71
      %p73 = scmp.ne.s32.totalorder %s65, %s68
      %p74 = scmp.eq.s32.totalorder %s13, 0
      %p75 = por %p73, %p74
      %p76 = scmp.ne.s32.totalorder %s65, %s68
      %p77 = scmp.eq.s32.totalorder %s18, 1
      %p78 = por %p76, %p77
      %p79 = scmp.ne.s32.totalorder %s68, %s69
      %p80 = scmp.eq.s32.totalorder %s18, 0
      %p81 = por %p79, %p80
      %p82 = scmp.ne.s32.totalorder %s68, %s69
      %p83 = scmp.eq.s32.totalorder %s19, 1
      %p84 = por %p82, %p83
      %p86 = scmp.ne.s32.totalorder %s69, %s85
      %p87 = scmp.eq.s32.totalorder %s19, 0
      %p88 = por %p86, %p87
      %p89 = scmp.le.s32.totalorder 1, %s13
      %p90 = scmp.lt.s32.totalorder %s13, 3
      %p91 = pnand %p89, %p90
      %p92 = pneg %p91
      // Predicated region
      $region9: #{tpu_custom_call.1} parent=5 // pred_check
        _
      $region10: #{tpu_custom_call.1} parent=5 // pred_check_branch
        %94 = sbr.rel (%p91) target = $region12
      $region11: #{tpu_custom_call.1} parent=5 // pred_region
        %s95 = ssub.s32 %s13, 1
      $region12: #{tpu_custom_call.1} parent=5 // pred_fallthru
        _
      %p96 = scmp.lt.s32.totalorder %s13, 2
      // Predicated region
      $region13: #{tpu_custom_call.1} parent=5 // pred_check
        %p97 = pneg %p96
      $region14: #{tpu_custom_call.1} parent=5 // pred_check_branch
        %99 = sbr.rel (%p97) target = $region16
      $region15: #{tpu_custom_call.1} parent=5 // pred_region
        // Predicated region
        $region17: #{tpu_custom_call.1} parent=15 // pred_check
          %p100 = pneg %p47
        $region18: #{tpu_custom_call.1} parent=15 // pred_check_branch
          %102 = sbr.rel (%p100) target = $region20
        $region19: #{tpu_custom_call.1} parent=15 // pred_region
          %s103 = sand.u32 %s37, 1
          %s104 = scalar_lea.sflag [#allocation3], %s103
          %s105 = sand.u32 %s37, 1
          %s106 = smul.addr %s105, 8
          %s107 = scalar_lea.vmem [#allocation2], %s106
          %s109 = ssub.s32 128, 128
          %110 = vsyncadd %s104, %s109
          %s111 = smul.addr %s20, 4
          %s112 = sadd.s32 %s21, %s111
          %s113 = smul.addr %s112, 32
          %s114 = scalar_lea.hbm %s0, %s113
          %s115 = sshll.u32 %s107, 4
          %s116 = int_to_ptr.vmem [resolvable:$true] %s115
          %121 = dma.hbm_to_vmem [thread:$0]  %s114, 128, %s116, %s104, 32, 32, 2
        $region20: #{tpu_custom_call.1} parent=15 // pred_fallthru
          _
      $region16: #{tpu_custom_call.1} parent=5 // pred_fallthru
        _
      %p122 = scmp.le.s32.totalorder 1, %s13
      %p123 = scmp.lt.s32.totalorder %s13, 3
      %p124 = pnand %p122, %p123
      %p125 = pneg %p124
      // Predicated region
      $region21: #{tpu_custom_call.1} parent=5 // pred_check
        _
      $region22: #{tpu_custom_call.1} parent=5 // pred_check_branch
        %127 = sbr.rel (%p124) target = $region24
      $region23: #{tpu_custom_call.1} parent=5 // pred_region
        %s128 = ssub.s32 %s13, 1
        %s129 = sand.u32 %s40, 1
        %s130 = scalar_lea.sflag [#allocation3], %s129
        %s131 = sand.u32 %s40, 1
        %s132 = smul.addr %s131, 8
        %s133 = scalar_lea.vmem [#allocation2], %s132
        // Predicated region
        $region25: #{tpu_custom_call.1} parent=23 // pred_check
          %p134 = pneg %p53
        $region26: #{tpu_custom_call.1} parent=23 // pred_check_branch
          %136 = sbr.rel (%p134) target = $region28
        $region27: #{tpu_custom_call.1} parent=23 // pred_region
          %137 = dma.done %s130, 128
        $region28: #{tpu_custom_call.1} parent=23 // pred_fallthru
          _
        %s138 = sand.u32 %s40, 1
        %s139 = scalar_lea.sflag [#allocation3], %s138
        %s140 = sand.u32 %s40, 1
        %s141 = smul.addr %s140, 8
        %s142 = scalar_lea.vmem [#allocation2], %s141
        %p143 = pneg %p53
        %p144 = pneg %p50
        %p145 = pneg %p81
        %p146 = pneg %p78
        %s147 = sand.u32 %s68, 1
        %s148 = scalar_lea.sflag [#allocation4], %s147
        %s149 = sand.u32 %s68, 1
        %s150 = smul.addr %s149, 2
        %s151 = scalar_lea.vmem [#allocation5], %s150
        %v152 = vld [vmem:[%s133] sm:$0x3]
        %v153 = vand.u32 2147483647, %v152
        %s154 = scalar_lea.vmem %s133, 2 [#allocation2]
        %v155 = vld [vmem:[%s154] sm:$0x3]
        %v156 = vand.u32 2147483647, %v155
        %vm157 = vcmp.gt.f32.partialorder %v156, %v153
        %v158 = vsel %vm157, %v156, %v153
        %v159 = vsel %vm157, %v155, %v152
        %s160 = scalar_lea.vmem %s133, 4 [#allocation2]
        %v161 = vld [vmem:[%s160] sm:$0x3]
        %v162 = vand.u32 2147483647, %v161
        %vm163 = vcmp.gt.f32.partialorder %v162, %v158
        %v164 = vsel %vm163, %v162, %v158
        %v165 = vsel %vm163, %v161, %v159
        %s166 = scalar_lea.vmem %s133, 6 [#allocation2]
        %v167 = vld [vmem:[%s166] sm:$0x3]
        %v168 = vand.u32 2147483647, %v167
        %vm169 = vcmp.gt.f32.partialorder %v168, %v164
        %v170 = vsel %vm169, %v167, %v165
        %171 = vst [vmem:[%s151] sm:$0x3] %v170
        %s172 = sand.u32 %s68, 1
        %s173 = scalar_lea.sflag [#allocation4], %s172
        %s174 = sand.u32 %s68, 1
        %s175 = smul.addr %s174, 2
        %s176 = scalar_lea.vmem [#allocation5], %s175
        // Predicated region
        $region29: #{tpu_custom_call.1} parent=23 // pred_check
          %p177 = pneg %p78
        $region30: #{tpu_custom_call.1} parent=23 // pred_check_branch
          %179 = sbr.rel (%p177) target = $region32
        $region31: #{tpu_custom_call.1} parent=23 // pred_region
          %s181 = ssub.s32 32, 32
          %182 = vsyncadd %s173, %s181
          %s183 = sadd.s32 %s23, %s22
          %s184 = smul.addr %s183, 32
          %s185 = scalar_lea.hbm %s1, %s184
          %s187 = sshll.u32 %s176, 4
          %s188 = int_to_ptr.vmem [resolvable:$true] %s187
          %190 = dma.vmem_to_hbm [thread:$0]  %s188, 32, %s185, %s173
        $region32: #{tpu_custom_call.1} parent=23 // pred_fallthru
          _
      $region24: #{tpu_custom_call.1} parent=5 // pred_fallthru
        _
      %p191 = scmp.le.s32.totalorder 2, %s13
      // Predicated region
      $region33: #{tpu_custom_call.1} parent=5 // pred_check
        %p192 = pneg %p191
      $region34: #{tpu_custom_call.1} parent=5 // pred_check_branch
        %194 = sbr.rel (%p192) target = $region36
      $region35: #{tpu_custom_call.1} parent=5 // pred_region
        %s195 = ssub.s32 %s13, 2
        // Predicated region
        $region37: #{tpu_custom_call.1} parent=35 // pred_check
          %p196 = pneg %p84
        $region38: #{tpu_custom_call.1} parent=35 // pred_check_branch
          %198 = sbr.rel (%p196) target = $region40
        $region39: #{tpu_custom_call.1} parent=35 // pred_region
          %s199 = sand.u32 %s69, 1
          %s200 = scalar_lea.sflag [#allocation4], %s199
          %s201 = sand.u32 %s69, 1
          %s202 = smul.addr %s201, 2
          %s203 = scalar_lea.vmem [#allocation5], %s202
          %204 = dma.done %s200, 32
        $region40: #{tpu_custom_call.1} parent=35 // pred_fallthru
          _
      $region36: #{tpu_custom_call.1} parent=5 // pred_fallthru
        _
    $region6: #{tpu_custom_call.1} parent=1 // loop_footer
      %s17 = sadd.s32 1, %s13
    $region7: #{tpu_custom_call.1} parent=1 // loop_footer_branch
      %12 = sbr.rel target = $region3
    $region8: #{tpu_custom_call.1} parent=1 // loop_exit
      _
    %205 = vsyncpa [#allocation3], 1
    %s206 = scalar_lea.sflag [#allocation3], 1
    %207 = vsyncpa %s206, 1
    %208 = vsyncpa [#allocation4], 1
    %s209 = scalar_lea.sflag [#allocation4], 1
    %210 = vsyncpa %s209, 1

</llo_original>
